<compile_context>
chip_gen: v7x
topology: tpu7x:2x2x1
jax: 0.10.0
libtpu: 0.0.40
codegen_flags: <defaults>
</compile_context>

<pallas_src>
import functools

import jax
import jax.numpy as jnp
from jax.experimental import pallas as pl
from jax.experimental.pallas import tpu as pltpu


def _conv3x3_kernel(x_ref, w_ref, b_ref, row_ref, col_ref, o_ref, p_ref, *,
                    n_batch, c_in, height, width):
    """Fused 3x3 same-conv over the whole batch.

    x_ref:   (N*Cin, H*W)    flat NCHW input, spatial in lanes
    w_ref:   (Cout, 9*Cin)   flattened weights, columns ordered (kh, kw, c)
    b_ref:   (Cout, 1)       bias
    row_ref: (N*Cin, H*W)    h index of each flattened spatial position (int32)
    col_ref: (N*Cin, H*W)    w index of each flattened spatial position (int32)
    o_ref:   (N, Cout, H*W)  output in NCHW order, spatial in lanes
    p_ref:   (9*Cin, N*H*W)  VMEM scratch: im2col patch matrix
    """
    hw = height * width
    x = x_ref[...]            # (N*Cin, H*W) f32, lane-dense
    row = row_ref[...]        # (N*Cin, H*W) int32
    col = col_ref[...]

    # Build the im2col patch matrix. Tap t = kh*3 + kw holds the input shifted
    # by (dh, dw) = (kh-1, kw-1). Rolling the flattened spatial axis by
    # dh*W + dw shifts row and column at once; the boundary masks zero exactly
    # the wrapped / out-of-image elements, which implements padding=1 without
    # ever materializing a padded array.
    taps = [(kh - 1, kw - 1) for kh in range(3) for kw in range(3)]
    for t, (dh, dw) in enumerate(taps):
        s = dh * width + dw
        # want shifted[r, p] == x[r, p + s] (zero outside the image)
        shifted = x if s == 0 else pltpu.roll(x, shift=(-s) % hw, axis=1)
        conds = []
        if dh > 0:
            conds.append(row < height - dh)
        elif dh < 0:
            conds.append(row >= -dh)
        if dw > 0:
            conds.append(col < width - dw)
        elif dw < 0:
            conds.append(col >= -dw)
        if conds:
            mask = functools.reduce(lambda a, b: a & b, conds)
            shifted = jnp.where(mask, shifted, 0.0)
        # Scatter the (n, c) rows into row (t*Cin + c), batch-major columns.
        for bi in range(n_batch):
            p_ref[t * c_in:(t + 1) * c_in, bi * hw:(bi + 1) * hw] = (
                shifted[bi * c_in:(bi + 1) * c_in, :])

    # Single fused MXU matmul: (Cout, 9*Cin) @ (9*Cin, N*H*W) -> (Cout, N*H*W).
    acc = jnp.dot(w_ref[...], p_ref[...], preferred_element_type=jnp.float32)
    acc = acc + b_ref[...]    # (Cout, 1) broadcast over lanes (full-width VPU)

    # Lane-dense stores (H*W = 256 lanes), directly in NCHW order.
    for bi in range(n_batch):
        o_ref[bi] = acc[:, bi * hw:(bi + 1) * hw].astype(o_ref.dtype)


@jax.jit
def bbox_predictor_forward(x_nchw, w_oihw, bias):
    """Equivalent of bbox_predictor.forward(X): Conv2d(k=3, padding=1), NCHW."""
    n, c_in, height, width = x_nchw.shape
    c_out = w_oihw.shape[0]
    hw = height * width

    # Free metadata reshapes only -- no transpose / pad HBM passes.
    x2d = x_nchw.reshape(n * c_in, hw)
    # Weight columns ordered (kh, kw, c) to match the kernel's tap order.
    w_flat = jnp.transpose(w_oihw, (0, 2, 3, 1)).reshape(c_out, 9 * c_in)
    b2d = bias.reshape(c_out, 1)
    hw_idx = jnp.arange(hw, dtype=jnp.int32)
    row_ids = jnp.broadcast_to((hw_idx // width)[None, :], (n * c_in, hw))
    col_ids = jnp.broadcast_to((hw_idx % width)[None, :], (n * c_in, hw))

    kernel = functools.partial(_conv3x3_kernel, n_batch=n, c_in=c_in,
                               height=height, width=width)

    # TODO(synk): for real SSD feature maps (large H*W) tile the spatial axis
    # with a grid so the (9*Cin, N*H*W) patch scratch stays within VMEM
    # (64 MiB budget on v7x); at this size everything fits in one step.
    out3 = pl.pallas_call(
        kernel,
        out_shape=jax.ShapeDtypeStruct((n, c_out, hw), jnp.float32),
        grid=(1,),
        in_specs=[
            pl.BlockSpec((n * c_in, hw), lambda i: (0, 0)),
            pl.BlockSpec((c_out, 9 * c_in), lambda i: (0, 0)),
            pl.BlockSpec((c_out, 1), lambda i: (0, 0)),
            pl.BlockSpec((n * c_in, hw), lambda i: (0, 0)),
            pl.BlockSpec((n * c_in, hw), lambda i: (0, 0)),
        ],
        out_specs=pl.BlockSpec((n, c_out, hw), lambda i: (0, 0, 0)),
        scratch_shapes=[pltpu.VMEM((9 * c_in, n * hw), jnp.float32)],
        compiler_params=pltpu.CompilerParams(
            dimension_semantics=("arbitrary",)),
    )(x2d, w_flat, b2d, row_ids, col_ids)

    # Free reshape back to NCHW -- no transpose pass.
    return out3.reshape(n, c_out, height, width)


if __name__ == "__main__":
    # Module hyper-parameters implied by SSD/ssd.py
    ratios = [[1, 2, 0.5]] * 5
    sizes = [[0.2, 0.272], [0.37, 0.447], [0.54, 0.619], [0.71, 0.79], [0.88, 0.961]]
    num_anchors = len(sizes[0]) + len(ratios[0]) - 1      # 4
    num_inputs = 4
    c_out = num_anchors * 4                               # 16

    batch, height, width = 2, 16, 16

    key = jax.random.PRNGKey(0)
    k_x, k_w, k_b = jax.random.split(key, 3)

    x = jax.random.normal(k_x, (batch, num_inputs, height, width), jnp.float32)

    # Conv2d-style init: uniform in +/- 1/sqrt(fan_in), weights in OIHW layout.
    fan_in = num_inputs * 3 * 3
    bound = float(1.0 / (fan_in ** 0.5))
    w_oihw = jax.random.uniform(k_w, (c_out, num_inputs, 3, 3), jnp.float32,
                                -bound, bound)
    bias = jax.random.uniform(k_b, (c_out,), jnp.float32, -bound, bound)

    y = bbox_predictor_forward(x, w_oihw, bias)
    y = jax.block_until_ready(y)

    # Reference: XLA conv with the same NCHW / OIHW semantics as PyTorch.
    ref = jax.lax.conv_general_dilated(
        x, w_oihw, window_strides=(1, 1), padding=((1, 1), (1, 1)),
        dimension_numbers=("NCHW", "OIHW", "NCHW"))
    ref = ref + bias.reshape(1, c_out, 1, 1)

    assert y.shape == (batch, c_out, height, width), y.shape
    assert jnp.allclose(y, ref, atol=1e-3, rtol=1e-3), \
        float(jnp.max(jnp.abs(y - ref)))
    print("KERNEL_OK")
</pallas_src>

<mosaic_0001>
module attributes {stable_mosaic.version = 11 : i64} {
  func.func @_conv3x3_kernel(%arg0: i32, %arg1: memref<8x256xf32, #tpu.memory_space<vmem>>, %arg2: memref<16x36xf32, #tpu.memory_space<vmem>>, %arg3: memref<16x1xf32, #tpu.memory_space<vmem>>, %arg4: memref<8x256xi32, #tpu.memory_space<vmem>>, %arg5: memref<8x256xi32, #tpu.memory_space<vmem>>, %arg6: memref<2x16x256xf32, #tpu.memory_space<vmem>>, %arg7: memref<36x512xf32, #tpu.memory_space<vmem>>) attributes {dimension_semantics = [#tpu.dimension_semantics<arbitrary>], iteration_bounds = array<i64: 1>, scalar_prefetch = 0 : i64, scratch_operands = 1 : i64, tpu.core_type = #tpu.core_type<tc>, window_params = [{pipeline_mode = #tpu.pipeline_mode<synchronous>, transform_indices = @transform_0, window_bounds = array<i64: 8, 256>}, {pipeline_mode = #tpu.pipeline_mode<synchronous>, transform_indices = @transform_1, window_bounds = array<i64: 16, 36>}, {pipeline_mode = #tpu.pipeline_mode<synchronous>, transform_indices = @transform_2, window_bounds = array<i64: 16, 1>}, {pipeline_mode = #tpu.pipeline_mode<synchronous>, transform_indices = @transform_3, window_bounds = array<i64: 8, 256>}, {pipeline_mode = #tpu.pipeline_mode<synchronous>, transform_indices = @transform_4, window_bounds = array<i64: 8, 256>}, {pipeline_mode = #tpu.pipeline_mode<synchronous>, transform_indices = @transform_5, window_bounds = array<i64: 2, 16, 256>}]} {
    %c0 = arith.constant 0 : index
    %c0_0 = arith.constant 0 : index
    %0 = vector.load %arg1[%c0, %c0_0] : memref<8x256xf32, #tpu.memory_space<vmem>>, vector<8x256xf32>
    %c0_1 = arith.constant 0 : index
    %c0_2 = arith.constant 0 : index
    %1 = vector.load %arg4[%c0_1, %c0_2] : memref<8x256xi32, #tpu.memory_space<vmem>>, vector<8x256xi32>
    %c0_3 = arith.constant 0 : index
    %c0_4 = arith.constant 0 : index
    %2 = vector.load %arg5[%c0_3, %c0_4] : memref<8x256xi32, #tpu.memory_space<vmem>>, vector<8x256xi32>
    %c17_i32 = arith.constant 17 : i32
    %3 = tpu.dynamic_rotate %0 by %c17_i32 dim 1 : vector<8x256xf32>, i32 -> vector<8x256xf32>
    %c1_i32 = arith.constant 1 : i32
    %4 = vector.broadcast %c1_i32 : i32 to vector<8x256xi32>
    %5 = arith.cmpi sge, %1, %4 : vector<8x256xi32>
    %c1_i32_5 = arith.constant 1 : i32
    %6 = vector.broadcast %c1_i32_5 : i32 to vector<8x256xi32>
    %7 = arith.cmpi sge, %2, %6 : vector<8x256xi32>
    %8 = arith.andi %5, %7 : vector<8x256xi1>
    %cst = arith.constant 0.000000e+00 : f32
    %9 = vector.broadcast %cst : f32 to vector<8x256xf32>
    %10 = arith.select %8, %3, %9 : vector<8x256xi1>, vector<8x256xf32>
    %11 = vector.extract_strided_slice %10 {offsets = [0, 0], sizes = [4, 256], strides = [1, 1]} : vector<8x256xf32> to vector<4x256xf32>
    %c0_6 = arith.constant 0 : index
    %c0_7 = arith.constant 0 : index
    %12 = vector.load %arg7[%c0_6, %c0_7] : memref<36x512xf32, #tpu.memory_space<vmem>>, vector<4x256xf32>
    tpu.vector_store %arg7[%c0_6, %c0_7], %11 {strides = array<i32>} : memref<36x512xf32, #tpu.memory_space<vmem>>, vector<4x256xf32>,
    %13 = vector.extract_strided_slice %10 {offsets = [4, 0], sizes = [4, 256], strides = [1, 1]} : vector<8x256xf32> to vector<4x256xf32>
    %c0_8 = arith.constant 0 : index
    %c256 = arith.constant 256 : index
    %14 = vector.load %arg7[%c0_8, %c256] : memref<36x512xf32, #tpu.memory_space<vmem>>, vector<4x256xf32>
    tpu.vector_store %arg7[%c0_8, %c256], %13 {strides = array<i32>} : memref<36x512xf32, #tpu.memory_space<vmem>>, vector<4x256xf32>,
    %c16_i32 = arith.constant 16 : i32
    %15 = tpu.dynamic_rotate %0 by %c16_i32 dim 1 : vector<8x256xf32>, i32 -> vector<8x256xf32>
    %c1_i32_9 = arith.constant 1 : i32
    %16 = vector.broadcast %c1_i32_9 : i32 to vector<8x256xi32>
    %17 = arith.cmpi sge, %1, %16 : vector<8x256xi32>
    %cst_10 = arith.constant 0.000000e+00 : f32
    %18 = vector.broadcast %cst_10 : f32 to vector<8x256xf32>
    %19 = arith.select %17, %15, %18 : vector<8x256xi1>, vector<8x256xf32>
    %20 = vector.extract_strided_slice %19 {offsets = [0, 0], sizes = [4, 256], strides = [1, 1]} : vector<8x256xf32> to vector<4x256xf32>
    %c4 = arith.constant 4 : index
    %c0_11 = arith.constant 0 : index
    %21 = vector.load %arg7[%c4, %c0_11] : memref<36x512xf32, #tpu.memory_space<vmem>>, vector<4x256xf32>
    tpu.vector_store %arg7[%c4, %c0_11], %20 {strides = array<i32>} : memref<36x512xf32, #tpu.memory_space<vmem>>, vector<4x256xf32>,
    %22 = vector.extract_strided_slice %19 {offsets = [4, 0], sizes = [4, 256], strides = [1, 1]} : vector<8x256xf32> to vector<4x256xf32>
    %c4_12 = arith.constant 4 : index
    %c256_13 = arith.constant 256 : index
    %23 = vector.load %arg7[%c4_12, %c256_13] : memref<36x512xf32, #tpu.memory_space<vmem>>, vector<4x256xf32>
    tpu.vector_store %arg7[%c4_12, %c256_13], %22 {strides = array<i32>} : memref<36x512xf32, #tpu.memory_space<vmem>>, vector<4x256xf32>,
    %c15_i32 = arith.constant 15 : i32
    %24 = tpu.dynamic_rotate %0 by %c15_i32 dim 1 : vector<8x256xf32>, i32 -> vector<8x256xf32>
    %c1_i32_14 = arith.constant 1 : i32
    %25 = vector.broadcast %c1_i32_14 : i32 to vector<8x256xi32>
    %26 = arith.cmpi sge, %1, %25 : vector<8x256xi32>
    %c15_i32_15 = arith.constant 15 : i32
    %27 = vector.broadcast %c15_i32_15 : i32 to vector<8x256xi32>
    %28 = arith.cmpi slt, %2, %27 : vector<8x256xi32>
    %29 = arith.andi %26, %28 : vector<8x256xi1>
    %cst_16 = arith.constant 0.000000e+00 : f32
    %30 = vector.broadcast %cst_16 : f32 to vector<8x256xf32>
    %31 = arith.select %29, %24, %30 : vector<8x256xi1>, vector<8x256xf32>
    %32 = vector.extract_strided_slice %31 {offsets = [0, 0], sizes = [4, 256], strides = [1, 1]} : vector<8x256xf32> to vector<4x256xf32>
    %c8 = arith.constant 8 : index
    %c0_17 = arith.constant 0 : index
    %33 = vector.load %arg7[%c8, %c0_17] : memref<36x512xf32, #tpu.memory_space<vmem>>, vector<4x256xf32>
    tpu.vector_store %arg7[%c8, %c0_17], %32 {strides = array<i32>} : memref<36x512xf32, #tpu.memory_space<vmem>>, vector<4x256xf32>,
    %34 = vector.extract_strided_slice %31 {offsets = [4, 0], sizes = [4, 256], strides = [1, 1]} : vector<8x256xf32> to vector<4x256xf32>
    %c8_18 = arith.constant 8 : index
    %c256_19 = arith.constant 256 : index
    %35 = vector.load %arg7[%c8_18, %c256_19] : memref<36x512xf32, #tpu.memory_space<vmem>>, vector<4x256xf32>
    tpu.vector_store %arg7[%c8_18, %c256_19], %34 {strides = array<i32>} : memref<36x512xf32, #tpu.memory_space<vmem>>, vector<4x256xf32>,
    %c1_i32_20 = arith.constant 1 : i32
    %36 = tpu.dynamic_rotate %0 by %c1_i32_20 dim 1 : vector<8x256xf32>, i32 -> vector<8x256xf32>
    %c1_i32_21 = arith.constant 1 : i32
    %37 = vector.broadcast %c1_i32_21 : i32 to vector<8x256xi32>
    %38 = arith.cmpi sge, %2, %37 : vector<8x256xi32>
    %cst_22 = arith.constant 0.000000e+00 : f32
    %39 = vector.broadcast %cst_22 : f32 to vector<8x256xf32>
    %40 = arith.select %38, %36, %39 : vector<8x256xi1>, vector<8x256xf32>
    %41 = vector.extract_strided_slice %40 {offsets = [0, 0], sizes = [4, 256], strides = [1, 1]} : vector<8x256xf32> to vector<4x256xf32>
    %c12 = arith.constant 12 : index
    %c0_23 = arith.constant 0 : index
    %42 = vector.load %arg7[%c12, %c0_23] : memref<36x512xf32, #tpu.memory_space<vmem>>, vector<4x256xf32>
    tpu.vector_store %arg7[%c12, %c0_23], %41 {strides = array<i32>} : memref<36x512xf32, #tpu.memory_space<vmem>>, vector<4x256xf32>,
    %43 = vector.extract_strided_slice %40 {offsets = [4, 0], sizes = [4, 256], strides = [1, 1]} : vector<8x256xf32> to vector<4x256xf32>
    %c12_24 = arith.constant 12 : index
    %c256_25 = arith.constant 256 : index
    %44 = vector.load %arg7[%c12_24, %c256_25] : memref<36x512xf32, #tpu.memory_space<vmem>>, vector<4x256xf32>
    tpu.vector_store %arg7[%c12_24, %c256_25], %43 {strides = array<i32>} : memref<36x512xf32, #tpu.memory_space<vmem>>, vector<4x256xf32>,
    %45 = vector.extract_strided_slice %0 {offsets = [0, 0], sizes = [4, 256], strides = [1, 1]} : vector<8x256xf32> to vector<4x256xf32>
    %c16 = arith.constant 16 : index
    %c0_26 = arith.constant 0 : index
    %46 = vector.load %arg7[%c16, %c0_26] : memref<36x512xf32, #tpu.memory_space<vmem>>, vector<4x256xf32>
    tpu.vector_store %arg7[%c16, %c0_26], %45 {strides = array<i32>} : memref<36x512xf32, #tpu.memory_space<vmem>>, vector<4x256xf32>,
    %47 = vector.extract_strided_slice %0 {offsets = [4, 0], sizes = [4, 256], strides = [1, 1]} : vector<8x256xf32> to vector<4x256xf32>
    %c16_27 = arith.constant 16 : index
    %c256_28 = arith.constant 256 : index
    %48 = vector.load %arg7[%c16_27, %c256_28] : memref<36x512xf32, #tpu.memory_space<vmem>>, vector<4x256xf32>
    tpu.vector_store %arg7[%c16_27, %c256_28], %47 {strides = array<i32>} : memref<36x512xf32, #tpu.memory_space<vmem>>, vector<4x256xf32>,
    %c255_i32 = arith.constant 255 : i32
    %49 = tpu.dynamic_rotate %0 by %c255_i32 dim 1 : vector<8x256xf32>, i32 -> vector<8x256xf32>
    %c15_i32_29 = arith.constant 15 : i32
    %50 = vector.broadcast %c15_i32_29 : i32 to vector<8x256xi32>
    %51 = arith.cmpi slt, %2, %50 : vector<8x256xi32>
    %cst_30 = arith.constant 0.000000e+00 : f32
    %52 = vector.broadcast %cst_30 : f32 to vector<8x256xf32>
    %53 = arith.select %51, %49, %52 : vector<8x256xi1>, vector<8x256xf32>
    %54 = vector.extract_strided_slice %53 {offsets = [0, 0], sizes = [4, 256], strides = [1, 1]} : vector<8x256xf32> to vector<4x256xf32>
    %c20 = arith.constant 20 : index
    %c0_31 = arith.constant 0 : index
    %55 = vector.load %arg7[%c20, %c0_31] : memref<36x512xf32, #tpu.memory_space<vmem>>, vector<4x256xf32>
    tpu.vector_store %arg7[%c20, %c0_31], %54 {strides = array<i32>} : memref<36x512xf32, #tpu.memory_space<vmem>>, vector<4x256xf32>,
    %56 = vector.extract_strided_slice %53 {offsets = [4, 0], sizes = [4, 256], strides = [1, 1]} : vector<8x256xf32> to vector<4x256xf32>
    %c20_32 = arith.constant 20 : index
    %c256_33 = arith.constant 256 : index
    %57 = vector.load %arg7[%c20_32, %c256_33] : memref<36x512xf32, #tpu.memory_space<vmem>>, vector<4x256xf32>
    tpu.vector_store %arg7[%c20_32, %c256_33], %56 {strides = array<i32>} : memref<36x512xf32, #tpu.memory_space<vmem>>, vector<4x256xf32>,
    %c241_i32 = arith.constant 241 : i32
    %58 = tpu.dynamic_rotate %0 by %c241_i32 dim 1 : vector<8x256xf32>, i32 -> vector<8x256xf32>
    %c15_i32_34 = arith.constant 15 : i32
    %59 = vector.broadcast %c15_i32_34 : i32 to vector<8x256xi32>
    %60 = arith.cmpi slt, %1, %59 : vector<8x256xi32>
    %c1_i32_35 = arith.constant 1 : i32
    %61 = vector.broadcast %c1_i32_35 : i32 to vector<8x256xi32>
    %62 = arith.cmpi sge, %2, %61 : vector<8x256xi32>
    %63 = arith.andi %60, %62 : vector<8x256xi1>
    %cst_36 = arith.constant 0.000000e+00 : f32
    %64 = vector.broadcast %cst_36 : f32 to vector<8x256xf32>
    %65 = arith.select %63, %58, %64 : vector<8x256xi1>, vector<8x256xf32>
    %66 = vector.extract_strided_slice %65 {offsets = [0, 0], sizes = [4, 256], strides = [1, 1]} : vector<8x256xf32> to vector<4x256xf32>
    %c24 = arith.constant 24 : index
    %c0_37 = arith.constant 0 : index
    %67 = vector.load %arg7[%c24, %c0_37] : memref<36x512xf32, #tpu.memory_space<vmem>>, vector<4x256xf32>
    tpu.vector_store %arg7[%c24, %c0_37], %66 {strides = array<i32>} : memref<36x512xf32, #tpu.memory_space<vmem>>, vector<4x256xf32>,
    %68 = vector.extract_strided_slice %65 {offsets = [4, 0], sizes = [4, 256], strides = [1, 1]} : vector<8x256xf32> to vector<4x256xf32>
    %c24_38 = arith.constant 24 : index
    %c256_39 = arith.constant 256 : index
    %69 = vector.load %arg7[%c24_38, %c256_39] : memref<36x512xf32, #tpu.memory_space<vmem>>, vector<4x256xf32>
    tpu.vector_store %arg7[%c24_38, %c256_39], %68 {strides = array<i32>} : memref<36x512xf32, #tpu.memory_space<vmem>>, vector<4x256xf32>,
    %c240_i32 = arith.constant 240 : i32
    %70 = tpu.dynamic_rotate %0 by %c240_i32 dim 1 : vector<8x256xf32>, i32 -> vector<8x256xf32>
    %c15_i32_40 = arith.constant 15 : i32
    %71 = vector.broadcast %c15_i32_40 : i32 to vector<8x256xi32>
    %72 = arith.cmpi slt, %1, %71 : vector<8x256xi32>
    %cst_41 = arith.constant 0.000000e+00 : f32
    %73 = vector.broadcast %cst_41 : f32 to vector<8x256xf32>
    %74 = arith.select %72, %70, %73 : vector<8x256xi1>, vector<8x256xf32>
    %75 = vector.extract_strided_slice %74 {offsets = [0, 0], sizes = [4, 256], strides = [1, 1]} : vector<8x256xf32> to vector<4x256xf32>
    %c28 = arith.constant 28 : index
    %c0_42 = arith.constant 0 : index
    %76 = vector.load %arg7[%c28, %c0_42] : memref<36x512xf32, #tpu.memory_space<vmem>>, vector<4x256xf32>
    tpu.vector_store %arg7[%c28, %c0_42], %75 {strides = array<i32>} : memref<36x512xf32, #tpu.memory_space<vmem>>, vector<4x256xf32>,
    %77 = vector.extract_strided_slice %74 {offsets = [4, 0], sizes = [4, 256], strides = [1, 1]} : vector<8x256xf32> to vector<4x256xf32>
    %c28_43 = arith.constant 28 : index
    %c256_44 = arith.constant 256 : index
    %78 = vector.load %arg7[%c28_43, %c256_44] : memref<36x512xf32, #tpu.memory_space<vmem>>, vector<4x256xf32>
    tpu.vector_store %arg7[%c28_43, %c256_44], %77 {strides = array<i32>} : memref<36x512xf32, #tpu.memory_space<vmem>>, vector<4x256xf32>,
    %c239_i32 = arith.constant 239 : i32
    %79 = tpu.dynamic_rotate %0 by %c239_i32 dim 1 : vector<8x256xf32>, i32 -> vector<8x256xf32>
    %c15_i32_45 = arith.constant 15 : i32
    %80 = vector.broadcast %c15_i32_45 : i32 to vector<8x256xi32>
    %81 = arith.cmpi slt, %1, %80 : vector<8x256xi32>
    %c15_i32_46 = arith.constant 15 : i32
    %82 = vector.broadcast %c15_i32_46 : i32 to vector<8x256xi32>
    %83 = arith.cmpi slt, %2, %82 : vector<8x256xi32>
    %84 = arith.andi %81, %83 : vector<8x256xi1>
    %cst_47 = arith.constant 0.000000e+00 : f32
    %85 = vector.broadcast %cst_47 : f32 to vector<8x256xf32>
    %86 = arith.select %84, %79, %85 : vector<8x256xi1>, vector<8x256xf32>
    %87 = vector.extract_strided_slice %86 {offsets = [0, 0], sizes = [4, 256], strides = [1, 1]} : vector<8x256xf32> to vector<4x256xf32>
    %c32 = arith.constant 32 : index
    %c0_48 = arith.constant 0 : index
    %88 = vector.load %arg7[%c32, %c0_48] : memref<36x512xf32, #tpu.memory_space<vmem>>, vector<4x256xf32>
    tpu.vector_store %arg7[%c32, %c0_48], %87 {strides = array<i32>} : memref<36x512xf32, #tpu.memory_space<vmem>>, vector<4x256xf32>,
    %89 = vector.extract_strided_slice %86 {offsets = [4, 0], sizes = [4, 256], strides = [1, 1]} : vector<8x256xf32> to vector<4x256xf32>
    %c32_49 = arith.constant 32 : index
    %c256_50 = arith.constant 256 : index
    %90 = vector.load %arg7[%c32_49, %c256_50] : memref<36x512xf32, #tpu.memory_space<vmem>>, vector<4x256xf32>
    tpu.vector_store %arg7[%c32_49, %c256_50], %89 {strides = array<i32>} : memref<36x512xf32, #tpu.memory_space<vmem>>, vector<4x256xf32>,
    %c0_51 = arith.constant 0 : index
    %c0_52 = arith.constant 0 : index
    %91 = vector.load %arg2[%c0_51, %c0_52] : memref<16x36xf32, #tpu.memory_space<vmem>>, vector<16x36xf32>
    %c0_53 = arith.constant 0 : index
    %c0_54 = arith.constant 0 : index
    %92 = vector.load %arg7[%c0_53, %c0_54] : memref<36x512xf32, #tpu.memory_space<vmem>>, vector<36x512xf32>
    %cst_55 = arith.constant dense<0.000000e+00> : vector<16x512xf32>
    %93 = tpu.matmul %91, %92, %cst_55 {dimension_numbers = #tpu.dot_dimension_numbers<[1], [0], [0], [1], [0, 0, 1, 1], [], []>} : vector<16x36xf32>, vector<36x512xf32>, vector<16x512xf32> -> vector<16x512xf32>
    %c0_56 = arith.constant 0 : index
    %c0_57 = arith.constant 0 : index
    %94 = vector.load %arg3[%c0_56, %c0_57] : memref<16x1xf32, #tpu.memory_space<vmem>>, vector<16x1xf32>
    %95 = vector.broadcast %94 : vector<16x1xf32> to vector<16x512xf32>
    %96 = arith.addf %93, %95 : vector<16x512xf32>
    %97 = vector.extract_strided_slice %96 {offsets = [0, 0], sizes = [16, 256], strides = [1, 1]} : vector<16x512xf32> to vector<16x256xf32>
    %c0_58 = arith.constant 0 : index
    %c0_59 = arith.constant 0 : index
    %c0_60 = arith.constant 0 : index
    %98 = vector.load %arg6[%c0_58, %c0_59, %c0_60] : memref<2x16x256xf32, #tpu.memory_space<vmem>>, vector<1x16x256xf32>
    %99 = vector.shape_cast %98 : vector<1x16x256xf32> to vector<16x256xf32>
    %100 = vector.shape_cast %97 : vector<16x256xf32> to vector<1x16x256xf32>
    tpu.vector_store %arg6[%c0_58, %c0_59, %c0_60], %100 {strides = array<i32>} : memref<2x16x256xf32, #tpu.memory_space<vmem>>, vector<1x16x256xf32>,
    %101 = vector.extract_strided_slice %96 {offsets = [0, 256], sizes = [16, 256], strides = [1, 1]} : vector<16x512xf32> to vector<16x256xf32>
    %c1 = arith.constant 1 : index
    %c0_61 = arith.constant 0 : index
    %c0_62 = arith.constant 0 : index
    %102 = vector.load %arg6[%c1, %c0_61, %c0_62] : memref<2x16x256xf32, #tpu.memory_space<vmem>>, vector<1x16x256xf32>
    %103 = vector.shape_cast %102 : vector<1x16x256xf32> to vector<16x256xf32>
    %104 = vector.shape_cast %101 : vector<16x256xf32> to vector<1x16x256xf32>
    tpu.vector_store %arg6[%c1, %c0_61, %c0_62], %104 {strides = array<i32>} : memref<2x16x256xf32, #tpu.memory_space<vmem>>, vector<1x16x256xf32>,
    return
  }
  func.func @transform_0(%arg0: i32) -> (i32, i32) {
    %c0_i32 = arith.constant 0 : i32
    %c0_i32_0 = arith.constant 0 : i32
    %c0_i32_1 = arith.constant 0 : i32
    return %c0_i32, %c0_i32_0 : i32, i32
  }
  func.func @transform_1(%arg0: i32) -> (i32, i32) {
    %c0_i32 = arith.constant 0 : i32
    %c0_i32_0 = arith.constant 0 : i32
    %c0_i32_1 = arith.constant 0 : i32
    return %c0_i32, %c0_i32_0 : i32, i32
  }
  func.func @transform_2(%arg0: i32) -> (i32, i32) {
    %c0_i32 = arith.constant 0 : i32
    %c0_i32_0 = arith.constant 0 : i32
    %c0_i32_1 = arith.constant 0 : i32
    return %c0_i32, %c0_i32_0 : i32, i32
  }
  func.func @transform_3(%arg0: i32) -> (i32, i32) {
    %c0_i32 = arith.constant 0 : i32
    %c0_i32_0 = arith.constant 0 : i32
    %c0_i32_1 = arith.constant 0 : i32
    return %c0_i32, %c0_i32_0 : i32, i32
  }
  func.func @transform_4(%arg0: i32) -> (i32, i32) {
    %c0_i32 = arith.constant 0 : i32
    %c0_i32_0 = arith.constant 0 : i32
    %c0_i32_1 = arith.constant 0 : i32
    return %c0_i32, %c0_i32_0 : i32, i32
  }
  func.func @transform_5(%arg0: i32) -> (i32, i32, i32) {
    %c0_i32 = arith.constant 0 : i32
    %c0_i32_0 = arith.constant 0 : i32
    %c0_i32_1 = arith.constant 0 : i32
    %c0_i32_2 = arith.constant 0 : i32
    return %c0_i32, %c0_i32_0, %c0_i32_1 : i32, i32, i32
  }
}

</mosaic_0001>

<llo_original>
// kernel: bbox_predictor_forward.1
$region0: #{bbox_predictor_forward.1}
  #allocation0 [shape = 'u32[]', space=smem, size = 0x4, offset = 0x4, fixed_abs, tag = 'smem constant byte address 0x4 - core index']
  #allocation1 [shape = 'u32[144,128]{1,0:T(1,128)}', space=vmem, size = 0x12000, scoped, tag = 'internal scratch']
  #allocation2 [shape = 'f32[36,512]{1,0:T(8,128)}', space=vmem, size = 0x14000, scoped, tag = 'scratch operand']
  %s0 = inlined_call_operand.vmem [shape: f32[8,256], index: 0, kind: input, shape index: {}]
  %s1 = inlined_call_operand.vmem [shape: f32[16,36], index: 1, kind: input, shape index: {}]
  %s2 = inlined_call_operand.vmem [shape: f32[16,1], index: 2, kind: input, shape index: {}]
  %s3 = inlined_call_operand.vmem [shape: s32[8,256], index: 3, kind: input, shape index: {}]
  %s4 = inlined_call_operand.vmem [shape: s32[8,256], index: 4, kind: input, shape index: {}]
  %s5 = inlined_call_operand.vmem [shape: f32[2,16,256], index: 5, kind: output, shape index: {}]
  %s6 = sld [smem:[#allocation0]]
  $region30: #{bbox_predictor_forward.1} parent=0
    _
  %s8 = ssub.s32 1, %s6
  %s9 = scalar_select 0, %s8, %s6
  // Predicated region
  $region2: #{bbox_predictor_forward.1} parent=0 // pred_check
    _
  $region3: #{bbox_predictor_forward.1} parent=0 // pred_check_branch
    %11 = sbr.rel (0) target = $region5
  $region4: #{bbox_predictor_forward.1} parent=0 // pred_region
    _
  $region5: #{bbox_predictor_forward.1} parent=0 // pred_fallthru
    _
  // Predicated region
  $region6: #{bbox_predictor_forward.1} parent=0 // pred_check
    _
  $region7: #{bbox_predictor_forward.1} parent=0 // pred_check_branch
    %13 = sbr.rel (0) target = $region9
  $region8: #{bbox_predictor_forward.1} parent=0 // pred_region
    _
  $region9: #{bbox_predictor_forward.1} parent=0 // pred_fallthru
    _
  // Predicated region
  $region10: #{bbox_predictor_forward.1} parent=0 // pred_check
    _
  $region11: #{bbox_predictor_forward.1} parent=0 // pred_check_branch
    %15 = sbr.rel (0) target = $region13
  $region12: #{bbox_predictor_forward.1} parent=0 // pred_region
    _
  $region13: #{bbox_predictor_forward.1} parent=0 // pred_fallthru
    _
  // Predicated region
  $region14: #{bbox_predictor_forward.1} parent=0 // pred_check
    _
  $region15: #{bbox_predictor_forward.1} parent=0 // pred_check_branch
    %17 = sbr.rel (0) target = $region17
  $region16: #{bbox_predictor_forward.1} parent=0 // pred_region
    _
  $region17: #{bbox_predictor_forward.1} parent=0 // pred_fallthru
    _
  // Predicated region
  $region18: #{bbox_predictor_forward.1} parent=0 // pred_check
    _
  $region19: #{bbox_predictor_forward.1} parent=0 // pred_check_branch
    %19 = sbr.rel (0) target = $region21
  $region20: #{bbox_predictor_forward.1} parent=0 // pred_region
    _
  $region21: #{bbox_predictor_forward.1} parent=0 // pred_fallthru
    _
  %v20 = vld [vmem:[%s0] sm:$0xff]
  %v21 = vld [vmem:[%s0 + $0x8] sm:$0xff]
  %v22 = vld [vmem:[%s3] sm:$0xff]
  %v23 = vld [vmem:[%s3 + $0x8] sm:$0xff]
  %v24 = vld [vmem:[%s4] sm:$0xff]
  %v25 = vld [vmem:[%s4 + $0x8] sm:$0xff]
  %26 = vrot.lane.b32.xlu0 %v20, 17
  %v27 = vpop.permute.xlu0 %26
  %28 = vrot.lane.b32.xlu0 %v21, 17
  %v29 = vpop.permute.xlu0 %28
  %v30 = vlaneseq
  %v31 = vand.u32 %v30, 127
  %vm32 = vcmp.lt.s32.totalorder %v31, 17
  %v33 = vsel %vm32, %v27, %v29
  %v34 = vsel %vm32, %v29, %v27
  %vm35 = vcmp.ge.s32.totalorder %v22, 1
  %vm36 = vcmp.ge.s32.totalorder %v23, 1
  %vm37 = vcmp.ge.s32.totalorder %v24, 1
  %vm38 = vcmp.ge.s32.totalorder %v25, 1
  %vm39 = vmand %vm35, %vm37
  %vm40 = vmand %vm36, %vm38
  %v41 = vsel %vm39, %v34, 0.0
  %v42 = vsel %vm40, %v33, 0.0
  %43 = vst [vmem:[#allocation2] sm:$0xf] %v41
  %44 = vst [vmem:[#allocation2 + $0x8] sm:$0xf] %v42
  %v47 = vrot.slane %v41, 4
  %v48 = vrot.slane %v42, 4
  %51 = vst [vmem:[#allocation2 + $0x10] sm:$0xf] %v47
  %52 = vst [vmem:[#allocation2 + $0x18] sm:$0xf] %v48
  %53 = vrot.lane.b32.xlu0 %v20, 16
  %v54 = vpop.permute.xlu0 %53
  %55 = vrot.lane.b32.xlu0 %v21, 16
  %v56 = vpop.permute.xlu0 %55
  %vm57 = vcmp.lt.s32.totalorder %v31, 16
  %v58 = vsel %vm57, %v54, %v56
  %v59 = vsel %vm57, %v56, %v54
  %v60 = vsel %vm35, %v59, 0.0
  %v61 = vsel %vm36, %v58, 0.0
  %v64 = vrot.slane %v60, 4
  %v65 = vrot.slane %v61, 4
  %68 = vst [vmem:[#allocation2] sm:$0xf0] %v64
  %69 = vst [vmem:[#allocation2 + $0x8] sm:$0xf0] %v65
  %70 = vst [vmem:[#allocation2 + $0x10] sm:$0xf0] %v60
  %71 = vst [vmem:[#allocation2 + $0x18] sm:$0xf0] %v61
  %72 = vrot.lane.b32.xlu0 %v20, 15
  %v73 = vpop.permute.xlu0 %72
  %74 = vrot.lane.b32.xlu0 %v21, 15
  %v75 = vpop.permute.xlu0 %74
  %vm76 = vcmp.lt.s32.totalorder %v31, 15
  %v77 = vsel %vm76, %v73, %v75
  %v78 = vsel %vm76, %v75, %v73
  %vm79 = vcmp.lt.s32.totalorder %v24, 15
  %vm80 = vcmp.lt.s32.totalorder %v25, 15
  %vm81 = vmand %vm35, %vm79
  %vm82 = vmand %vm36, %vm80
  %v83 = vsel %vm81, %v78, 0.0
  %v84 = vsel %vm82, %v77, 0.0
  %85 = vst [vmem:[#allocation2 + $0x20] sm:$0xf] %v83
  %86 = vst [vmem:[#allocation2 + $0x28] sm:$0xf] %v84
  %v89 = vrot.slane %v83, 4
  %v90 = vrot.slane %v84, 4
  %93 = vst [vmem:[#allocation2 + $0x30] sm:$0xf] %v89
  %94 = vst [vmem:[#allocation2 + $0x38] sm:$0xf] %v90
  %95 = vrot.lane.b32.xlu0 %v20, 1
  %v96 = vpop.permute.xlu0 %95
  %97 = vrot.lane.b32.xlu0 %v21, 1
  %v98 = vpop.permute.xlu0 %97
  %vm99 = vcmp.lt.s32.totalorder %v31, 1
  %v100 = vsel %vm99, %v96, %v98
  %v101 = vsel %vm99, %v98, %v96
  %v102 = vsel %vm37, %v101, 0.0
  %v103 = vsel %vm38, %v100, 0.0
  %v106 = vrot.slane %v102, 4
  %v107 = vrot.slane %v103, 4
  %110 = vst [vmem:[#allocation2 + $0x20] sm:$0xf0] %v106
  %111 = vst [vmem:[#allocation2 + $0x28] sm:$0xf0] %v107
  %112 = vst [vmem:[#allocation2 + $0x30] sm:$0xf0] %v102
  %113 = vst [vmem:[#allocation2 + $0x38] sm:$0xf0] %v103
  %114 = vst [vmem:[#allocation2 + $0x40] sm:$0xf] %v20
  %115 = vst [vmem:[#allocation2 + $0x48] sm:$0xf] %v21
  %v118 = vrot.slane %v20, 4
  %v119 = vrot.slane %v21, 4
  %122 = vst [vmem:[#allocation2 + $0x50] sm:$0xf] %v118
  %123 = vst [vmem:[#allocation2 + $0x58] sm:$0xf] %v119
  %124 = vrot.lane.b32.xlu0 %v20, 127
  %v125 = vpop.permute.xlu0 %124
  %126 = vrot.lane.b32.xlu0 %v21, 127
  %v127 = vpop.permute.xlu0 %126
  %vm128 = vcmp.lt.s32.totalorder %v31, 127
  %v129 = vsel %vm128, %v125, %v127
  %v130 = vsel %vm128, %v127, %v125
  %v131 = vsel %vm79, %v129, 0.0
  %v132 = vsel %vm80, %v130, 0.0
  %v135 = vrot.slane %v131, 4
  %v136 = vrot.slane %v132, 4
  %139 = vst [vmem:[#allocation2 + $0x40] sm:$0xf0] %v135
  %140 = vst [vmem:[#allocation2 + $0x48] sm:$0xf0] %v136
  %141 = vst [vmem:[#allocation2 + $0x50] sm:$0xf0] %v131
  %142 = vst [vmem:[#allocation2 + $0x58] sm:$0xf0] %v132
  %143 = vrot.lane.b32.xlu0 %v20, 113
  %v144 = vpop.permute.xlu0 %143
  %145 = vrot.lane.b32.xlu0 %v21, 113
  %v146 = vpop.permute.xlu0 %145
  %vm147 = vcmp.lt.s32.totalorder %v31, 113
  %v148 = vsel %vm147, %v144, %v146
  %v149 = vsel %vm147, %v146, %v144
  %vm150 = vcmp.lt.s32.totalorder %v22, 15
  %vm151 = vcmp.lt.s32.totalorder %v23, 15
  %vm152 = vmand %vm150, %vm37
  %vm153 = vmand %vm151, %vm38
  %v154 = vsel %vm152, %v148, 0.0
  %v155 = vsel %vm153, %v149, 0.0
  %156 = vst [vmem:[#allocation2 + $0x60] sm:$0xf] %v154
  %157 = vst [vmem:[#allocation2 + $0x68] sm:$0xf] %v155
  %v160 = vrot.slane %v154, 4
  %v161 = vrot.slane %v155, 4
  %164 = vst [vmem:[#allocation2 + $0x70] sm:$0xf] %v160
  %165 = vst [vmem:[#allocation2 + $0x78] sm:$0xf] %v161
  %166 = vrot.lane.b32.xlu0 %v20, 112
  %v167 = vpop.permute.xlu0 %166
  %168 = vrot.lane.b32.xlu0 %v21, 112
  %v169 = vpop.permute.xlu0 %168
  %vm170 = vcmp.lt.s32.totalorder %v31, 112
  %v171 = vsel %vm170, %v167, %v169
  %v172 = vsel %vm170, %v169, %v167
  %v173 = vsel %vm150, %v171, 0.0
  %v174 = vsel %vm151, %v172, 0.0
  %v177 = vrot.slane %v173, 4
  %v178 = vrot.slane %v174, 4
  %181 = vst [vmem:[#allocation2 + $0x60] sm:$0xf0] %v177
  %182 = vst [vmem:[#allocation2 + $0x68] sm:$0xf0] %v178
  %183 = vst [vmem:[#allocation2 + $0x70] sm:$0xf0] %v173
  %184 = vst [vmem:[#allocation2 + $0x78] sm:$0xf0] %v174
  %185 = vrot.lane.b32.xlu0 %v20, 111
  %v186 = vpop.permute.xlu0 %185
  %187 = vrot.lane.b32.xlu0 %v21, 111
  %v188 = vpop.permute.xlu0 %187
  %vm189 = vcmp.lt.s32.totalorder %v31, 111
  %v190 = vsel %vm189, %v186, %v188
  %v191 = vsel %vm189, %v188, %v186
  %vm192 = vmand %vm150, %vm79
  %vm193 = vmand %vm151, %vm80
  %v194 = vsel %vm192, %v190, 0.0
  %v195 = vsel %vm193, %v191, 0.0
  %196 = vst [vmem:[#allocation2 + $0x80] sm:$0xf] %v194
  %197 = vst [vmem:[#allocation2 + $0x88] sm:$0xf] %v195
  %v200 = vrot.slane %v194, 4
  %v201 = vrot.slane %v195, 4
  %204 = vst [vmem:[#allocation2 + $0x90] sm:$0xf] %v200
  %205 = vst [vmem:[#allocation2 + $0x98] sm:$0xf] %v201
  %v206 = vld [vmem:[%s1] sm:$0xff]
  %v207 = vld [vmem:[%s1 + $0x8] sm:$0xff]
  %v208 = vld [vmem:[#allocation2] sm:$0xff]
  %v209 = vld [vmem:[#allocation2 + $0x8] sm:$0xff]
  %v210 = vld [vmem:[#allocation2 + $0x10] sm:$0xff]
  %v211 = vld [vmem:[#allocation2 + $0x18] sm:$0xff]
  %v212 = vld [vmem:[#allocation2 + $0x20] sm:$0xff]
  %v213 = vld [vmem:[#allocation2 + $0x28] sm:$0xff]
  %v214 = vld [vmem:[#allocation2 + $0x30] sm:$0xff]
  %v215 = vld [vmem:[#allocation2 + $0x38] sm:$0xff]
  %v216 = vld [vmem:[#allocation2 + $0x40] sm:$0xff]
  %v217 = vld [vmem:[#allocation2 + $0x48] sm:$0xff]
  %v218 = vld [vmem:[#allocation2 + $0x50] sm:$0xff]
  %v219 = vld [vmem:[#allocation2 + $0x58] sm:$0xff]
  %v220 = vld [vmem:[#allocation2 + $0x60] sm:$0xff]
  %v221 = vld [vmem:[#allocation2 + $0x68] sm:$0xff]
  %v222 = vld [vmem:[#allocation2 + $0x70] sm:$0xff]
  %v223 = vld [vmem:[#allocation2 + $0x78] sm:$0xff]
  %v224 = vld [vmem:[#allocation2 + $0x80] sm:$0xf]
  %v225 = vld [vmem:[#allocation2 + $0x88] sm:$0xf]
  %v226 = vld [vmem:[#allocation2 + $0x90] sm:$0xf]
  %v227 = vld [vmem:[#allocation2 + $0x98] sm:$0xf]
  %v228 = vld [vmem:[%s2] sm:$0xff]
  %v229 = vld [vmem:[%s2 + $0x8] sm:$0xff]
  %231 = vset.pattern.permute.xlu0 0
  %232 = vperm.xlu0 %231, %v228
  %v233 = vpop.permute.xlu0 %232
  %236 = vset.pattern.permute.xlu0 0
  %237 = vperm.xlu0 %236, %v229
  %v238 = vpop.permute.xlu0 %237
  %vm240 = vcmask 293888
  %v242 = vsel %vm240, %v206, 0
  %v245 = vsel %vm240, %v207, 0
  %vm247 = vcmask 1043456
  %v249 = vsel %vm247, %v224, 0
  %v252 = vsel %vm247, %v225, 0
  %v255 = vsel %vm247, %v226, 0
  %v258 = vsel %vm247, %v227, 0
  %260 = vmatprep.subr.mxu0 %v209
  %261 = vmatpush1.msra.mxu0 %v208
  %262 = vmatprep.subr.mxu0 %v213
  %263 = vmatpush1.msra.mxu0 %v212
  %264 = vmatprep.subr.mxu0 %v217
  %265 = vmatpush1.msra.mxu0 %v216
  %266 = vmatprep.subr.mxu0 %v221
  %267 = vmatpush1.msra.mxu0 %v220
  %268 = vmatprep.subr.mxu0 %v252
  %269 = vmatpush1.msra.mxu0 %v249
  %270 = vmatprep.subr.mxu0 0.0
  %271 = vmatpush1.msra.mxu0 0.0
  %272 = vmatprep.subr.mxu0 0.0
  %273 = vmatpush1.msra.mxu0 0.0
  %274 = vmatprep.subr.mxu0 0.0
  %275 = vmatpush1.msra.mxu0 0.0
  %276 = vmatprep.subr.mxu0 0.0
  %277 = vmatpush1.msra.mxu0 0.0
  %278 = vmatprep.subr.mxu0 0.0
  %279 = vmatpush1.msra.mxu0 0.0
  %280 = vmatprep.subr.mxu0 0.0
  %281 = vmatpush1.msra.mxu0 0.0
  %282 = vmatprep.subr.mxu0 0.0
  %283 = vmatpush1.msra.mxu0 0.0
  %284 = vmatprep.subr.mxu0 0.0
  %285 = vmatpush1.msra.mxu0 0.0
  %286 = vmatprep.subr.mxu0 0.0
  %287 = vmatpush1.msra.mxu0 0.0
  %288 = vmatprep.subr.mxu0 0.0
  %289 = vmatpush1.msra.mxu0 0.0
  %290 = vmatprep.subr.mxu0 0.0
  %291 = vmatpush1.msra.mxu0 0.0
  %292 = vmatprep.subr.mxu0 0.0
  %293 = vmatpush1.msra.mxu0 0.0
  %294 = vmatprep.subr.mxu0 0.0
  %295 = vmatpush1.msra.mxu0 0.0
  %296 = vmatprep.subr.mxu0 0.0
  %297 = vmatpush1.msra.mxu0 0.0
  %298 = vmatprep.subr.mxu0 0.0
  %299 = vmatpush1.msra.mxu0 0.0
  %300 = vmatprep.subr.mxu0 0.0
  %301 = vmatpush1.msra.mxu0 0.0
  %302 = vmatprep.subr.mxu0 0.0
  %303 = vmatpush1.msra.mxu0 0.0
  %304 = vmatprep.subr.mxu0 0.0
  %305 = vmatpush1.msra.mxu0 0.0
  %306 = vmatprep.subr.mxu0 0.0
  %307 = vmatpush1.msra.mxu0 0.0
  %308 = vmatprep.subr.mxu0 0.0
  %309 = vmatpush1.msra.mxu0 0.0
  %310 = vmatprep.subr.mxu0 0.0
  %311 = vmatpush1.msra.mxu0 0.0
  %312 = vmatprep.subr.mxu0 0.0
  %313 = vmatpush1.msra.mxu0 0.0
  %314 = vmatprep.subr.mxu0 0.0
  %315 = vmatpush1.msra.mxu0 0.0
  %316 = vmatprep.subr.mxu0 0.0
  %317 = vmatpush1.msra.mxu0 0.0
  %318 = vmatprep.subr.mxu0 0.0
  %319 = vmatpush1.msra.mxu0 0.0
  %320 = vmatprep.subr.mxu0 0.0
  %321 = vmatpush1.msra.mxu0 0.0
  %322 = vmatprep.subr.mxu0 0.0
  %323 = vmatpush1.msra.mxu0 0.0
  %324 = vmatprep.mubr.f32.mxu0 0.0
  %325 = vmatmul.mubr.f32.gmra.mrb[0].mxu0 %v242
  %v326 = vpop.f32.mrb[0].mxu0
  %v327 = vadd.f32 %v233, %v326
  %v328 = vpop.f32.mrb[0].mxu0
  %v329 = vadd.f32 %v233, %v328
  %330 = vmatprep.mubr.f32.mxu0 0.0
  %331 = vmatmul.mubr.f32.gmra.mrb[0].mxu0 %v245
  %v332 = vpop.f32.mrb[0].mxu0
  %v333 = vadd.f32 %v238, %v332
  %v334 = vpop.f32.mrb[0].mxu0
  %v335 = vadd.f32 %v238, %v334
  %336 = vdwg.mxu0
  %337 = vmatprep.subr.mxu0 %v211
  %338 = vmatpush1.msra.mxu0 %v210
  %339 = vmatprep.subr.mxu0 %v215
  %340 = vmatpush1.msra.mxu0 %v214
  %341 = vmatprep.subr.mxu0 %v219
  %342 = vmatpush1.msra.mxu0 %v218
  %343 = vmatprep.subr.mxu0 %v223
  %344 = vmatpush1.msra.mxu0 %v222
  %345 = vmatprep.subr.mxu0 %v258
  %346 = vmatpush1.msra.mxu0 %v255
  %347 = vmatprep.subr.mxu0 0.0
  %348 = vmatpush1.msra.mxu0 0.0
  %349 = vmatprep.subr.mxu0 0.0
  %350 = vmatpush1.msra.mxu0 0.0
  %351 = vmatprep.subr.mxu0 0.0
  %352 = vmatpush1.msra.mxu0 0.0
  %353 = vmatprep.subr.mxu0 0.0
  %354 = vmatpush1.msra.mxu0 0.0
  %355 = vmatprep.subr.mxu0 0.0
  %356 = vmatpush1.msra.mxu0 0.0
  %357 = vmatprep.subr.mxu0 0.0
  %358 = vmatpush1.msra.mxu0 0.0
  %359 = vmatprep.subr.mxu0 0.0
  %360 = vmatpush1.msra.mxu0 0.0
  %361 = vmatprep.subr.mxu0 0.0
  %362 = vmatpush1.msra.mxu0 0.0
  %363 = vmatprep.subr.mxu0 0.0
  %364 = vmatpush1.msra.mxu0 0.0
  %365 = vmatprep.subr.mxu0 0.0
  %366 = vmatpush1.msra.mxu0 0.0
  %367 = vmatprep.subr.mxu0 0.0
  %368 = vmatpush1.msra.mxu0 0.0
  %369 = vmatprep.subr.mxu0 0.0
  %370 = vmatpush1.msra.mxu0 0.0
  %371 = vmatprep.subr.mxu0 0.0
  %372 = vmatpush1.msra.mxu0 0.0
  %373 = vmatprep.subr.mxu0 0.0
  %374 = vmatpush1.msra.mxu0 0.0
  %375 = vmatprep.subr.mxu0 0.0
  %376 = vmatpush1.msra.mxu0 0.0
  %377 = vmatprep.subr.mxu0 0.0
  %378 = vmatpush1.msra.mxu0 0.0
  %379 = vmatprep.subr.mxu0 0.0
  %380 = vmatpush1.msra.mxu0 0.0
  %381 = vmatprep.subr.mxu0 0.0
  %382 = vmatpush1.msra.mxu0 0.0
  %383 = vmatprep.subr.mxu0 0.0
  %384 = vmatpush1.msra.mxu0 0.0
  %385 = vmatprep.subr.mxu0 0.0
  %386 = vmatpush1.msra.mxu0 0.0
  %387 = vmatprep.subr.mxu0 0.0
  %388 = vmatpush1.msra.mxu0 0.0
  %389 = vmatprep.subr.mxu0 0.0
  %390 = vmatpush1.msra.mxu0 0.0
  %391 = vmatprep.subr.mxu0 0.0
  %392 = vmatpush1.msra.mxu0 0.0
  %393 = vmatprep.subr.mxu0 0.0
  %394 = vmatpush1.msra.mxu0 0.0
  %395 = vmatprep.subr.mxu0 0.0
  %396 = vmatpush1.msra.mxu0 0.0
  %397 = vmatprep.subr.mxu0 0.0
  %398 = vmatpush1.msra.mxu0 0.0
  %399 = vmatprep.subr.mxu0 0.0
  %400 = vmatpush1.msra.mxu0 0.0
  %401 = vmatprep.mubr.f32.mxu0 0.0
  %402 = vmatmul.mubr.f32.gmra.mrb[0].mxu0 %v242
  %v403 = vpop.f32.mrb[0].mxu0
  %v404 = vadd.f32 %v233, %v403
  %v405 = vpop.f32.mrb[0].mxu0
  %v406 = vadd.f32 %v233, %v405
  %407 = vmatprep.mubr.f32.mxu0 0.0
  %408 = vmatmul.mubr.f32.gmra.mrb[0].mxu0 %v245
  %v409 = vpop.f32.mrb[0].mxu0
  %v410 = vadd.f32 %v238, %v409
  %v411 = vpop.f32.mrb[0].mxu0
  %v412 = vadd.f32 %v238, %v411
  %413 = vdwg.mxu0
  %414 = vst [vmem:[%s5] sm:$0xff] %v327
  %415 = vst [vmem:[%s5 + $0x8] sm:$0xff] %v329
  %416 = vst [vmem:[%s5 + $0x10] sm:$0xff] %v333
  %417 = vst [vmem:[%s5 + $0x18] sm:$0xff] %v335
  %s418 = scalar_lea.vmem %s5, 32
  %419 = vst [vmem:[%s418] sm:$0xff] %v404
  %420 = vst [vmem:[%s418 + $0x8] sm:$0xff] %v406
  %421 = vst [vmem:[%s418 + $0x10] sm:$0xff] %v410
  %422 = vst [vmem:[%s418 + $0x18] sm:$0xff] %v412
  // Predicated region
  $region22: #{bbox_predictor_forward.1} parent=0 // pred_check
    _
  $region23: #{bbox_predictor_forward.1} parent=0 // pred_check_branch
    %424 = sbr.rel (0) target = $region25
  $region24: #{bbox_predictor_forward.1} parent=0 // pred_region
    _
  $region25: #{bbox_predictor_forward.1} parent=0 // pred_fallthru
    _
  // Predicated region
  $region26: #{bbox_predictor_forward.1} parent=0 // pred_check
    _
  $region27: #{bbox_predictor_forward.1} parent=0 // pred_check_branch
    %426 = sbr.rel (0) target = $region29
  $region28: #{bbox_predictor_forward.1} parent=0 // pred_region
    _
  $region29: #{bbox_predictor_forward.1} parent=0 // pred_fallthru
    _

</llo_original>
